<compile_context>
chip_gen: v7x
topology: tpu7x:2x2x1
jax: 0.10.0
libtpu: 0.0.40
codegen_flags: <defaults>
</compile_context>

<pallas_src>
import functools

import jax
import jax.numpy as jnp
from jax.experimental import pallas as pl
from jax.experimental.pallas import tpu as pltpu

_LANE = 128


def _cdiv(a, b):
    return -(-a // b)


def _round_up(a, b):
    return _cdiv(a, b) * b


def _layernorm_kernel(x_ref, g_ref, b_ref, o_ref, *, eps, feat):
    x = x_ref[...].astype(jnp.float32)                         # (tm, F)
    mean = jnp.sum(x, axis=-1, keepdims=True) * (1.0 / feat)    # (tm, 1)
    diff = x - mean
    denom = max(feat - 1, 1)                                    # unbiased std
    var = jnp.sum(diff * diff, axis=-1, keepdims=True) * (1.0 / denom)
    std = jnp.sqrt(var)
    # Per-row reciprocal on the (tm, 1) column instead of a (tm, F) divide.
    # approx=True lands on the EUP slot; one Newton step restores f32 accuracy
    # with two cheap column-wide multiplies.
    d = std + eps
    inv = pl.reciprocal(d, approx=True)
    inv = inv * (2.0 - d * inv)
    g = g_ref[...].astype(jnp.float32)                           # (1, F)
    b = b_ref[...].astype(jnp.float32)                           # (1, F)
    o_ref[...] = ((diff * inv) * g + b).astype(o_ref.dtype)


def _vmem_budget():
    """(vmem_limit_bytes, tile_budget_bytes), generation-aware with safe fallback."""
    cap = None
    try:
        cap = getattr(pltpu.get_tpu_info(), "vmem_capacity_bytes", None)
    except Exception:
        cap = None
    if cap is None:
        cap = 64 * 1024 * 1024                       # assume smallest (v7x-safe)
    if cap <= 64 * 1024 * 1024:                      # v7x: 64 MiB per TC
        return 38 * 1024 * 1024, 16 * 1024 * 1024
    return 64 * 1024 * 1024, 28 * 1024 * 1024        # v5e / v6e: 128 MiB


def _choose_row_tile(rows, feat, itemsize, pack, tile_budget_bytes,
                     target_tile_bytes=2 * 1024 * 1024, max_rows=8192):
    """Pick a row tile: ~target_tile_bytes per input buffer, within VMEM budget,
    sublane-pack aligned, with an even grid-step count when rows allow."""
    feat_lane = _round_up(feat, _LANE)               # VMEM per-row layout width
    # Double-buffered input + output tiles, plus f32 compute temporaries.
    per_row = 4 * feat_lane * itemsize + 3 * feat_lane * 4
    tm = min(tile_budget_bytes // per_row,
             target_tile_bytes // max(feat_lane * itemsize, 1),
             max_rows)
    tm = max(pack, (tm // pack) * pack)
    tm = min(tm, _round_up(rows, pack))
    if rows > tm:
        # Prefer an even number of grid steps (v7x has 2 TensorCores).
        n = _cdiv(rows, tm)
        if n % 2 == 1 and n > 1:
            tm = max(pack, _round_up(_cdiv(rows, n + 1), pack))
    elif rows > 2 * pack:
        # Everything fits in one tile: split in two so both cores get work.
        tm = max(pack, _round_up(_cdiv(rows, 2), pack))
    return tm


def layer_norm(x, a_2, b_2, eps=1e-6, *, row_tile=None):
    """x: [..., F]; a_2, b_2: [F]. Returns same shape/dtype as x."""
    orig_shape = x.shape
    feat = orig_shape[-1]
    rows = 1
    for d in orig_shape[:-1]:
        rows *= d
    x2 = x.reshape(rows, feat)
    g2 = a_2.reshape(1, feat)
    b2 = b_2.reshape(1, feat)

    itemsize = jnp.dtype(x.dtype).itemsize
    pack = max(8, 32 // max(itemsize, 1))            # 8 f32, 16 bf16, 32 int8/fp8

    vmem_limit, tile_budget = _vmem_budget()
    if row_tile is None:
        tm = _choose_row_tile(rows, feat, itemsize, pack, tile_budget)
    else:
        tm = min(max(pack, _round_up(row_tile, pack)), _round_up(rows, pack))

    grid = (pl.cdiv(rows, tm),)                      # tail block masked on store
    kernel = functools.partial(_layernorm_kernel, eps=eps, feat=feat)

    # gamma/beta index_maps are constant across the grid, so Pallas keeps the
    # same VMEM block and does not re-DMA them per step.
    # TODO(synk): for very small F (<=64), pack k rows per 128-lane vreg row
    # (segmented reductions) to recover the wasted lane bandwidth.
    out = pl.pallas_call(
        kernel,
        out_shape=jax.ShapeDtypeStruct((rows, feat), x.dtype),
        grid_spec=pltpu.PrefetchScalarGridSpec(
            num_scalar_prefetch=0,
            grid=grid,
            in_specs=[
                pl.BlockSpec((tm, feat), lambda i: (i, 0)),
                pl.BlockSpec((1, feat), lambda i: (0, 0)),
                pl.BlockSpec((1, feat), lambda i: (0, 0)),
            ],
            out_specs=pl.BlockSpec((tm, feat), lambda i: (i, 0)),
        ),
        compiler_params=pltpu.CompilerParams(
            dimension_semantics=("parallel",),
            vmem_limit_bytes=vmem_limit,
        ),
    )(x2, g2, b2)

    return out.reshape(orig_shape)


def _reference(x, a_2, b_2, eps=1e-6):
    x32 = x.astype(jnp.float32)
    mean = jnp.mean(x32, axis=-1, keepdims=True)
    var = jnp.sum((x32 - mean) ** 2, axis=-1, keepdims=True) / max(x.shape[-1] - 1, 1)
    std = jnp.sqrt(var)
    return (a_2 * (x32 - mean) / (std + eps) + b_2).astype(x.dtype)


if __name__ == "__main__":
    key = jax.random.PRNGKey(0)

    # Check 1: small shape, F not a multiple of 128 (masked-lane / full-F path).
    batch, seq, features = 2, 8, 32                  # x: [2, 8, 32]
    x = jax.random.normal(key, (batch, seq, features), dtype=jnp.float32)
    a_2 = jnp.ones((features,), dtype=jnp.float32)   # nn.Parameter(torch.ones(F))
    b_2 = jnp.zeros((features,), dtype=jnp.float32)  # nn.Parameter(torch.zeros(F))
    out = jax.block_until_ready(layer_norm(x, a_2, b_2, eps=1e-6))
    ref = _reference(x, a_2, b_2, eps=1e-6)
    assert out.shape == x.shape and out.dtype == x.dtype
    assert jnp.allclose(out, ref, atol=1e-4, rtol=1e-4), "mismatch vs reference (F=32)"

    # Check 2: module-like F=512, odd row count (row-remainder / lane-dense path).
    f2 = 512
    x_b = jax.random.normal(jax.random.PRNGKey(1), (3, 5, f2), dtype=jnp.float32)
    a_b = jax.random.normal(jax.random.PRNGKey(2), (f2,), dtype=jnp.float32)
    b_b = jax.random.normal(jax.random.PRNGKey(3), (f2,), dtype=jnp.float32)
    out_b = jax.block_until_ready(layer_norm(x_b, a_b, b_b, eps=1e-6))
    ref_b = _reference(x_b, a_b, b_b, eps=1e-6)
    assert jnp.allclose(out_b, ref_b, atol=1e-4, rtol=1e-4), "mismatch vs reference (F=512)"

    # Check 3: multi-tile row path (even grid) with explicit row_tile override.
    x_c = jax.random.normal(jax.random.PRNGKey(4), (30, 10, f2), dtype=jnp.float32)
    out_c = jax.block_until_ready(layer_norm(x_c, a_b, b_b, eps=1e-6, row_tile=64))
    ref_c = _reference(x_c, a_b, b_b, eps=1e-6)
    assert jnp.allclose(out_c, ref_c, atol=1e-4, rtol=1e-4), "mismatch vs reference (30x10x512)"

    print("KERNEL_OK")
</pallas_src>

<mosaic_0001>
module attributes {stable_mosaic.version = 11 : i64} {
  func.func @_layernorm_kernel(%arg0: i32, %arg1: memref<16x32xf32, #tpu.memory_space<vmem>>, %arg2: memref<1x32xf32, #tpu.memory_space<vmem>>, %arg3: memref<1x32xf32, #tpu.memory_space<vmem>>, %arg4: memref<16x32xf32, #tpu.memory_space<vmem>>) attributes {dimension_semantics = [#tpu.dimension_semantics<parallel>], iteration_bounds = array<i64: 1>, scalar_prefetch = 0 : i64, scratch_operands = 0 : i64, tpu.core_type = #tpu.core_type<tc>, window_params = [{transform_indices = @transform_0, window_bounds = array<i64: 16, 32>}, {pipeline_mode = #tpu.pipeline_mode<synchronous>, transform_indices = @transform_1, window_bounds = array<i64: 1, 32>}, {pipeline_mode = #tpu.pipeline_mode<synchronous>, transform_indices = @transform_2, window_bounds = array<i64: 1, 32>}, {transform_indices = @transform_3, window_bounds = array<i64: 16, 32>}]} {
    %c0 = arith.constant 0 : index
    %c0_0 = arith.constant 0 : index
    %0 = vector.load %arg1[%c0, %c0_0] : memref<16x32xf32, #tpu.memory_space<vmem>>, vector<16x32xf32>
    %cst = arith.constant dense<0.000000e+00> : vector<16xf32>
    %1 = vector.multi_reduction <add>, %0, %cst [1] : vector<16x32xf32> to vector<16xf32>
    %2 = vector.shape_cast %1 : vector<16xf32> to vector<16x1xf32>
    %cst_1 = arith.constant 3.125000e-02 : f32
    %3 = vector.broadcast %cst_1 : f32 to vector<16x1xf32>
    %4 = arith.mulf %2, %3 : vector<16x1xf32>
    %5 = vector.broadcast %4 : vector<16x1xf32> to vector<16x32xf32>
    %6 = arith.subf %0, %5 : vector<16x32xf32>
    %7 = arith.mulf %6, %6 : vector<16x32xf32>
    %cst_2 = arith.constant dense<0.000000e+00> : vector<16xf32>
    %8 = vector.multi_reduction <add>, %7, %cst_2 [1] : vector<16x32xf32> to vector<16xf32>
    %9 = vector.shape_cast %8 : vector<16xf32> to vector<16x1xf32>
    %cst_3 = arith.constant 0.0322580636 : f32
    %10 = vector.broadcast %cst_3 : f32 to vector<16x1xf32>
    %11 = arith.mulf %9, %10 : vector<16x1xf32>
    %12 = math.sqrt %11 : vector<16x1xf32>
    %cst_4 = arith.constant 9.99999997E-7 : f32
    %13 = vector.broadcast %cst_4 : f32 to vector<16x1xf32>
    %14 = arith.addf %12, %13 : vector<16x1xf32>
    %15 = tpu.reciprocal %14 {approx = true} : vector<16x1xf32> -> vector<16x1xf32>
    %16 = arith.mulf %14, %15 : vector<16x1xf32>
    %cst_5 = arith.constant 2.000000e+00 : f32
    %17 = vector.broadcast %cst_5 : f32 to vector<16x1xf32>
    %18 = arith.subf %17, %16 : vector<16x1xf32>
    %19 = arith.mulf %15, %18 : vector<16x1xf32>
    %c0_6 = arith.constant 0 : index
    %c0_7 = arith.constant 0 : index
    %20 = vector.load %arg2[%c0_6, %c0_7] : memref<1x32xf32, #tpu.memory_space<vmem>>, vector<1x32xf32>
    %c0_8 = arith.constant 0 : index
    %c0_9 = arith.constant 0 : index
    %21 = vector.load %arg3[%c0_8, %c0_9] : memref<1x32xf32, #tpu.memory_space<vmem>>, vector<1x32xf32>
    %22 = vector.broadcast %19 : vector<16x1xf32> to vector<16x32xf32>
    %23 = arith.mulf %6, %22 : vector<16x32xf32>
    %24 = vector.broadcast %20 : vector<1x32xf32> to vector<16x32xf32>
    %25 = arith.mulf %23, %24 : vector<16x32xf32>
    %26 = vector.broadcast %21 : vector<1x32xf32> to vector<16x32xf32>
    %27 = arith.addf %25, %26 : vector<16x32xf32>
    %c0_10 = arith.constant 0 : index
    %c0_11 = arith.constant 0 : index
    %28 = vector.load %arg4[%c0_10, %c0_11] : memref<16x32xf32, #tpu.memory_space<vmem>>, vector<16x32xf32>
    tpu.vector_store %arg4[%c0_10, %c0_11], %27 {strides = array<i32>} : memref<16x32xf32, #tpu.memory_space<vmem>>, vector<16x32xf32>,
    return
  }
  func.func @transform_0(%arg0: i32) -> (i32, i32) {
    %c0_i32 = arith.constant 0 : i32
    %c0_i32_0 = arith.constant 0 : i32
    return %arg0, %c0_i32 : i32, i32
  }
  func.func @transform_1(%arg0: i32) -> (i32, i32) {
    %c0_i32 = arith.constant 0 : i32
    %c0_i32_0 = arith.constant 0 : i32
    %c0_i32_1 = arith.constant 0 : i32
    return %c0_i32, %c0_i32_0 : i32, i32
  }
  func.func @transform_2(%arg0: i32) -> (i32, i32) {
    %c0_i32 = arith.constant 0 : i32
    %c0_i32_0 = arith.constant 0 : i32
    %c0_i32_1 = arith.constant 0 : i32
    return %c0_i32, %c0_i32_0 : i32, i32
  }
  func.func @transform_3(%arg0: i32) -> (i32, i32) {
    %c0_i32 = arith.constant 0 : i32
    %c0_i32_0 = arith.constant 0 : i32
    return %arg0, %c0_i32 : i32, i32
  }
}

</mosaic_0001>

<llo_original>
// kernel: tpu_custom_call.1
$region0: #{tpu_custom_call.1}
  #allocation0 [shape = 'u32[]', space=smem, size = 0x4, offset = 0x4, fixed_abs, tag = 'smem constant byte address 0x4 - core index']
  #allocation1 [shape = 'u32[144,128]{1,0:T(1,128)}', space=vmem, size = 0x12000, scoped, tag = 'internal scratch']
  %s0 = inlined_call_operand.hbm [shape: f32[16,32], index: 0, kind: input, shape index: {}]
  %s1 = inlined_call_operand.vmem [shape: f32[1,32], index: 1, kind: input, shape index: {}]
  %s2 = inlined_call_operand.vmem [shape: f32[1,32], index: 2, kind: input, shape index: {}]
  %s3 = inlined_call_operand.hbm [shape: f32[16,32], index: 3, kind: output, shape index: {}]
  %s4 = sld [smem:[#allocation0]]
  $region26: #{tpu_custom_call.1} parent=0
    _
  %s6 = ssub.s32 1, %s4
  %s7 = scalar_select 0, %s6, %s4
  $region1: #{tpu_custom_call.1} parent=0
    #allocation2 [shape = 'u8[8192]{0}', space=vmem, size = 0x2000, scoped, tag = 'input window, operand 0, single buffered']
    #allocation3 [shape = 's32[1]{0}', space=sflag, size = 0x4, scoped, tag = 'scoped memory for tpu_custom_call.1']
    #allocation4 [shape = 's32[1]{0}', space=sflag, size = 0x4, scoped, tag = 'scoped memory for tpu_custom_call.1']
    #allocation5 [shape = 'u8[8192]{0}', space=vmem, size = 0x2000, scoped, tag = 'output window, operand 0, single buffered']
    %8 = vsyncpa [#allocation3], 0
    %9 = vsyncpa [#allocation4], 0
    // Predicated region
    $region2: #{tpu_custom_call.1} parent=1 // pred_check
      _
    $region3: #{tpu_custom_call.1} parent=1 // pred_check_branch
      %11 = sbr.rel (0) target = $region5
    $region4: #{tpu_custom_call.1} parent=1 // pred_region
      %s13 = ssub.s32 256, 256
      %14 = vsyncadd [#allocation3], %s13
      %s15 = sshll.u32 [#allocation2], 4
      %s16 = int_to_ptr.vmem [resolvable:$true] %s15
      %21 = dma.hbm_to_vmem [thread:$0]  %s0, 256, %s16, [#allocation3], 128, 128, 8
    $region5: #{tpu_custom_call.1} parent=1 // pred_fallthru
      _
    // Predicated region
    $region6: #{tpu_custom_call.1} parent=1 // pred_check
      _
    $region7: #{tpu_custom_call.1} parent=1 // pred_check_branch
      %23 = sbr.rel (0) target = $region9
    $region8: #{tpu_custom_call.1} parent=1 // pred_region
      _
    $region9: #{tpu_custom_call.1} parent=1 // pred_fallthru
      _
    // Predicated region
    $region10: #{tpu_custom_call.1} parent=1 // pred_check
      _
    $region11: #{tpu_custom_call.1} parent=1 // pred_check_branch
      %25 = sbr.rel (0) target = $region13
    $region12: #{tpu_custom_call.1} parent=1 // pred_region
      _
    $region13: #{tpu_custom_call.1} parent=1 // pred_fallthru
      _
    // Predicated region
    $region14: #{tpu_custom_call.1} parent=1 // pred_check
      _
    $region15: #{tpu_custom_call.1} parent=1 // pred_check_branch
      %27 = sbr.rel (0) target = $region17
    $region16: #{tpu_custom_call.1} parent=1 // pred_region
      %28 = dma.done [#allocation3], 256
    $region17: #{tpu_custom_call.1} parent=1 // pred_fallthru
      _
    %v29 = vld [vmem:[#allocation2] sm:$0xff]
    %v30 = vld [vmem:[#allocation2 + $0x8] sm:$0xff]
    %vm31 = vcmask 261120
    %v32 = vsel %vm31, %v29, 0.0
    %33 = vadd.xlane.f32.xlu0 %v32
    %v34 = vpop.xlane.xlu0 %33
    %v35 = vsel %vm31, %v30, 0.0
    %36 = vadd.xlane.f32.xlu0 %v35
    %v37 = vpop.xlane.xlu0 %36
    %v38 = vmul.f32 %v34, 0.03125
    %v39 = vmul.f32 %v37, 0.03125
    %v40 = vsub.f32 %v29, %v38
    %v41 = vsub.f32 %v30, %v39
    %v42 = vmul.f32 %v40, %v40
    %v43 = vmul.f32 %v41, %v41
    %v44 = vsel %vm31, %v42, 0.0
    %45 = vadd.xlane.f32.xlu0 %v44
    %v46 = vpop.xlane.xlu0 %45
    %v47 = vsel %vm31, %v43, 0.0
    %48 = vadd.xlane.f32.xlu0 %v47
    %v49 = vpop.xlane.xlu0 %48
    %v50 = vmul.f32 %v46, 0.032258064
    %v51 = vmul.f32 %v49, 0.032258064
    %v52 = vrsqrt.pop %v50
    %v53 = vmul.f32 %v50, %v52
    %vm54 = vcmp.eq.f32.partialorder %v50, inf
    %v55 = vsel %vm54, %v50, %v53
    %vm56 = vcmp.eq.f32.partialorder %v50, 0.0
    %v57 = vand.u32 %v50, 2147483648
    %v58 = vsel %vm56, %v57, %v55
    %v59 = vrsqrt.pop %v51
    %v60 = vmul.f32 %v51, %v59
    %vm61 = vcmp.eq.f32.partialorder %v51, inf
    %v62 = vsel %vm61, %v51, %v60
    %vm63 = vcmp.eq.f32.partialorder %v51, 0.0
    %v64 = vand.u32 %v51, 2147483648
    %v65 = vsel %vm63, %v64, %v62
    %v66 = vadd.f32 %v58, 1e-06
    %v67 = vadd.f32 %v65, 1e-06
    %v68 = vrcp.pop %v66
    %v69 = vrcp.pop %v67
    %v70 = vmul.f32 %v66, %v68
    %v71 = vmul.f32 %v67, %v69
    %v72 = vsub.f32 2.0, %v70
    %v73 = vsub.f32 2.0, %v71
    %v74 = vmul.f32 %v68, %v72
    %v75 = vmul.f32 %v69, %v73
    %v76 = vld [vmem:[%s1] sm:$0x1]
    %v77 = vld [vmem:[%s2] sm:$0x1]
    %v78 = vmul.f32 %v40, %v74
    %v79 = vmul.f32 %v41, %v75
    %v81 = vlaneseq
    %v82 = vshrl.u32 %v81, 7
    %v83 = vsub.s32 0, %v82
    %v84 = vrot.slane %v76, %v83
    %v86 = vmul.f32 %v78, %v84
    %v87 = vmul.f32 %v79, %v84
    %v89 = vlaneseq
    %v90 = vshrl.u32 %v89, 7
    %v91 = vsub.s32 0, %v90
    %v92 = vrot.slane %v77, %v91
    %v94 = vadd.f32 %v86, %v92
    %v95 = vadd.f32 %v87, %v92
    %96 = vst.msk [vmem:[#allocation5] sm:$0xff] %vm31, %v94
    %97 = vst.msk [vmem:[#allocation5 + $0x8] sm:$0xff] %vm31, %v95
    // Predicated region
    $region18: #{tpu_custom_call.1} parent=1 // pred_check
      _
    $region19: #{tpu_custom_call.1} parent=1 // pred_check_branch
      %99 = sbr.rel (0) target = $region21
    $region20: #{tpu_custom_call.1} parent=1 // pred_region
      %s101 = ssub.s32 256, 256
      %102 = vsyncadd [#allocation4], %s101
      %s103 = sshll.u32 [#allocation5], 4
      %s104 = int_to_ptr.vmem [resolvable:$true] %s103
      %109 = dma.vmem_to_hbm [thread:$0]  %s104, 256, %s3, [#allocation4], 128, 128, 8
    $region21: #{tpu_custom_call.1} parent=1 // pred_fallthru
      _
    // Predicated region
    $region22: #{tpu_custom_call.1} parent=1 // pred_check
      _
    $region23: #{tpu_custom_call.1} parent=1 // pred_check_branch
      %111 = sbr.rel (0) target = $region25
    $region24: #{tpu_custom_call.1} parent=1 // pred_region
      %112 = dma.done [#allocation4], 256
    $region25: #{tpu_custom_call.1} parent=1 // pred_fallthru
      _
    %113 = vsyncpa [#allocation3], 1
    %114 = vsyncpa [#allocation4], 1

</llo_original>
